<compile_context>
chip_gen: v7x
topology: tpu7x:2x2x1
jax: 0.10.0
libtpu: 0.0.40
codegen_flags: <defaults>
</compile_context>

<pallas_src>
import functools

import jax
import jax.numpy as jnp
from jax import lax
from jax.experimental import pallas as pl
from jax.experimental.pallas import tpu as pltpu


# ---------------------------------------------------------------------------
# Hyperbolic math helpers
# ---------------------------------------------------------------------------
def _artanh(x):
    # geoopt-style clamp for numerical stability
    x = jnp.clip(x, -1.0 + 1e-5, 1.0 - 1e-5)
    return 0.5 * jnp.log((1.0 + x) / (1.0 - x))


def _dist_from_dots(xx, yy, xy, c, sqrt_c):
    """Poincare distance d(x, y) from row-wise dot products (all (TB,1)).

    mobius_add(-x, y) = (alpha * (-x) + beta * y) / den with
      alpha = 1 - 2 c <x,y> + c |y|^2
      beta  = 1 - c |x|^2
      den   = 1 - 2 c <x,y> + c^2 |x|^2 |y|^2
    so ||mobius_add(-x,y)||^2 = (alpha^2 xx - 2 alpha beta xy + beta^2 yy)/den^2.
    """
    alpha = 1.0 - 2.0 * c * xy + c * yy
    beta = 1.0 - c * xx
    den = 1.0 - 2.0 * c * xy + c * c * xx * yy
    num_norm2 = alpha * alpha * xx - 2.0 * alpha * beta * xy + beta * beta * yy
    inv_den = pl.reciprocal(jnp.maximum(den, 1e-15))  # hoisted: (TB,1), not (TB,D)
    norm = jnp.sqrt(jnp.maximum(num_norm2 * inv_den * inv_den, 1e-15))
    return (2.0 / sqrt_c) * _artanh(sqrt_c * norm)


def _dist0_from_norm2(xx, c, sqrt_c):
    norm = jnp.sqrt(jnp.maximum(xx, 1e-15))
    return (2.0 / sqrt_c) * _artanh(sqrt_c * norm)


# ---------------------------------------------------------------------------
# Pallas kernel: one batch tile -> per-tile partial sums
# ---------------------------------------------------------------------------
def _hit_loss_kernel(valid_b_ref, a_ref, p_ref, n_ref, out_ref, *,
                     c, cluster_margin, centri_margin, block_b):
    i = pl.program_id(0)
    sqrt_c = c ** 0.5

    a = a_ref[...].astype(jnp.float32)
    p = p_ref[...].astype(jnp.float32)
    n = n_ref[...].astype(jnp.float32)

    # Row-wise dot products, each computed exactly once per tile; shape (TB, 1).
    aa = jnp.sum(a * a, axis=-1, keepdims=True)
    pp = jnp.sum(p * p, axis=-1, keepdims=True)
    nn = jnp.sum(n * n, axis=-1, keepdims=True)
    ap = jnp.sum(a * p, axis=-1, keepdims=True)
    an = jnp.sum(a * n, axis=-1, keepdims=True)

    d_ap = _dist_from_dots(aa, pp, ap, c, sqrt_c)
    d_an = _dist_from_dots(aa, nn, an, c, sqrt_c)
    d0_a = _dist0_from_norm2(aa, c, sqrt_c)
    d0_p = _dist0_from_norm2(pp, c, sqrt_c)

    cluster = jnp.maximum(d_ap - d_an + cluster_margin, 0.0)
    centri = jnp.maximum(centri_margin + d0_p - d0_a, 0.0)

    # Mask the ragged last tile (rows >= B).  jnp.where is a select, so any
    # NaN/Inf derived from undefined data past the end of the array is dropped.
    row = i * block_b + lax.broadcasted_iota(jnp.int32, cluster.shape, 0)
    valid = row < valid_b_ref[0]
    cl_sum = jnp.sum(jnp.where(valid, cluster, 0.0))
    ce_sum = jnp.sum(jnp.where(valid, centri, 0.0))

    # Lane-dense (1, 8, 128) partial-sum slab: sublane 0 = cluster, 1 = centri.
    r = lax.broadcasted_iota(jnp.int32, out_ref.shape, 1)
    out_ref[...] = jnp.where(r == 0, cl_sum, jnp.where(r == 1, ce_sum, 0.0))


# ---------------------------------------------------------------------------
# Wrapper
# ---------------------------------------------------------------------------
def _round_up(x, m):
    return (x + m - 1) // m * m


def _sublane_multiple(dtype):
    # Min second-to-last tile dim: 8 for 4-byte, 16 for 2-byte, 32 for 1-byte.
    return max(8, 32 // jnp.dtype(dtype).itemsize)


def hierarchy_transformer_loss(rep_anchor, rep_positive, rep_negative, *,
                               curvature,
                               clustering_loss_weight=1.0,
                               clustering_loss_margin=5.0,
                               centripetal_loss_weight=1.0,
                               centripetal_loss_margin=0.5,
                               block_b=512):
    """block_b: max batch rows per grid step.  The wrapper keeps tiles in the
    256-1024-row memory-bound sweet spot and guarantees >= 2 grid tiles
    whenever B allows it (v7x megacore sharding + DMA/compute overlap)."""
    B, D = rep_anchor.shape
    assert rep_positive.shape == (B, D) and rep_negative.shape == (B, D)

    sub = _sublane_multiple(rep_anchor.dtype)
    # At least two tiles when B allows it; rounded to the dtype sublane packing.
    tb = min(_round_up(max(int(block_b), sub), sub),
             _round_up(int(pl.cdiv(B, 2)), sub))
    tb = max(tb, sub)
    num_tiles = int(pl.cdiv(B, tb))   # ragged last tile is masked in-kernel

    # Scoped-VMEM budget from actual needs (no hard-coded 64 MiB):
    # double-buffered input tiles + double-buffered output slab + f32 temps.
    in_itemsize = jnp.dtype(rep_anchor.dtype).itemsize
    vmem_need = (3 * 2 * tb * D * in_itemsize   # pipelined a/p/n tiles
                 + 2 * 8 * 128 * 4              # pipelined output slab
                 + 8 * tb * D * 4)              # f32 upcasts / products
    vmem_limit = max(16 << 20, int(vmem_need) + (8 << 20))

    kernel = functools.partial(
        _hit_loss_kernel,
        c=float(curvature),
        cluster_margin=float(clustering_loss_margin),
        centri_margin=float(centripetal_loss_margin),
        block_b=int(tb),
    )

    # Valid batch size delivered via scalar prefetch (SMEM); no jnp.pad copies.
    valid_b = jnp.array([B], dtype=jnp.int32)

    partials = pl.pallas_call(
        kernel,
        out_shape=jax.ShapeDtypeStruct((num_tiles, 8, 128), jnp.float32),
        grid_spec=pltpu.PrefetchScalarGridSpec(
            num_scalar_prefetch=1,
            grid=(num_tiles,),
            in_specs=[pl.BlockSpec((tb, D), lambda i, vb: (i, 0))
                      for _ in range(3)],
            out_specs=pl.BlockSpec((1, 8, 128), lambda i, vb: (i, 0, 0)),
        ),
        compiler_params=pltpu.CompilerParams(
            dimension_semantics=("parallel",),   # no carried state -> both TCs
            vmem_limit_bytes=int(vmem_limit)),
    )(valid_b, rep_anchor, rep_positive, rep_negative)

    # Tiny finalize in the JAX wrapper: sum per-tile partials, take means.
    cl_mean = jnp.sum(partials[:, 0, 0]) / B
    ce_mean = jnp.sum(partials[:, 1, 0]) / B
    loss = (float(clustering_loss_weight) * cl_mean
            + float(centripetal_loss_weight) * ce_mean)
    return {"loss": loss, "cluster_loss": cl_mean, "centri_loss": ce_mean}


# ---------------------------------------------------------------------------
# Pure-JAX reference (naive elementwise formulation, for correctness checking)
# ---------------------------------------------------------------------------
def _ref_mobius_add_neg(x, y, c):
    x = -x
    xy = jnp.sum(x * y, axis=-1, keepdims=True)
    x2 = jnp.sum(x * x, axis=-1, keepdims=True)
    y2 = jnp.sum(y * y, axis=-1, keepdims=True)
    num = (1.0 + 2.0 * c * xy + c * y2) * x + (1.0 - c * x2) * y
    den = 1.0 + 2.0 * c * xy + c * c * x2 * y2
    return num / jnp.maximum(den, 1e-15)


def _ref_dist(x, y, c, sqrt_c):
    ma = _ref_mobius_add_neg(x, y, c)
    norm = jnp.sqrt(jnp.maximum(jnp.sum(ma * ma, axis=-1), 1e-15))
    return (2.0 / sqrt_c) * _artanh(sqrt_c * norm)


def _ref_dist0(x, c, sqrt_c):
    norm = jnp.sqrt(jnp.maximum(jnp.sum(x * x, axis=-1), 1e-15))
    return (2.0 / sqrt_c) * _artanh(sqrt_c * norm)


def _reference(a, p, n, c, cl_m, ce_m, cl_w, ce_w):
    sqrt_c = c ** 0.5
    a = a.astype(jnp.float32)
    p = p.astype(jnp.float32)
    n = n.astype(jnp.float32)
    cluster = jnp.mean(jnp.maximum(_ref_dist(a, p, c, sqrt_c)
                                   - _ref_dist(a, n, c, sqrt_c) + cl_m, 0.0))
    centri = jnp.mean(jnp.maximum(ce_m + _ref_dist0(p, c, sqrt_c)
                                  - _ref_dist0(a, c, sqrt_c), 0.0))
    return cl_w * cluster + ce_w * centri, cluster, centri


if __name__ == "__main__":
    D = 32
    curvature = 1.0 / D  # HiT convention: c = 1 / embed_dim
    cl_m, ce_m, cl_w, ce_w = 5.0, 0.5, 1.0, 1.0

    key = jax.random.PRNGKey(0)

    # Configs exercise: ragged last tile + in-kernel masking (no jnp.pad),
    # >= 2 parallel tiles, bf16 sublane rounding (16), and the near-duplicate
    # anchor==positive cancellation case.
    configs = [
        dict(B=12, block_b=512, dtype=jnp.float32, dup_pos=False,
             rtol=1e-4, atol=1e-4),   # tb=8, 2 tiles, last tile ragged
        dict(B=16, block_b=8, dtype=jnp.float32, dup_pos=False,
             rtol=1e-4, atol=1e-4),   # 2 exact tiles of 8 rows
        dict(B=24, block_b=512, dtype=jnp.float32, dup_pos=True,
             rtol=1e-4, atol=1e-4),   # anchor == positive (cancellation check)
        dict(B=20, block_b=512, dtype=jnp.bfloat16, dup_pos=False,
             rtol=1e-4, atol=5e-4),   # bf16 -> tb rounded to 16, ragged tile
    ]

    for cfg in configs:
        B = cfg["B"]
        key, ka, kp, kn = jax.random.split(key, 4)
        # Embeddings strictly inside the Poincare ball of radius 1/sqrt(c).
        scale = 0.4 * (1.0 / curvature ** 0.5) / (D ** 0.5)
        rep_anchor = (scale * jax.random.normal(ka, (B, D))).astype(cfg["dtype"])
        if cfg["dup_pos"]:
            rep_positive = rep_anchor
        else:
            rep_positive = (scale * jax.random.normal(kp, (B, D))).astype(cfg["dtype"])
        rep_negative = (scale * jax.random.normal(kn, (B, D))).astype(cfg["dtype"])

        out = hierarchy_transformer_loss(
            rep_anchor, rep_positive, rep_negative,
            curvature=curvature,
            clustering_loss_weight=cl_w, clustering_loss_margin=cl_m,
            centripetal_loss_weight=ce_w, centripetal_loss_margin=ce_m,
            block_b=cfg["block_b"],
        )
        jax.block_until_ready(out["loss"])

        ref_loss, ref_cluster, ref_centri = _reference(
            rep_anchor, rep_positive, rep_negative,
            curvature, cl_m, ce_m, cl_w, ce_w)

        rtol, atol = cfg["rtol"], cfg["atol"]
        assert jnp.allclose(out["loss"], ref_loss, rtol=rtol, atol=atol), (
            cfg, out["loss"], ref_loss)
        assert jnp.allclose(out["cluster_loss"], ref_cluster, rtol=rtol, atol=atol), (
            cfg, out["cluster_loss"], ref_cluster)
        assert jnp.allclose(out["centri_loss"], ref_centri, rtol=rtol, atol=atol), (
            cfg, out["centri_loss"], ref_centri)

    print("KERNEL_OK")
</pallas_src>

<mosaic_0001>
module attributes {stable_mosaic.version = 11 : i64} {
  func.func @_hit_loss_kernel(%arg0: i32, %arg1: memref<1xi32, #tpu.memory_space<smem>>, %arg2: memref<8x32xf32, #tpu.memory_space<vmem>>, %arg3: memref<8x32xf32, #tpu.memory_space<vmem>>, %arg4: memref<8x32xf32, #tpu.memory_space<vmem>>, %arg5: memref<1x8x128xf32, #tpu.memory_space<vmem>>) attributes {dimension_semantics = [#tpu.dimension_semantics<parallel>], iteration_bounds = array<i64: 2>, scalar_prefetch = 1 : i64, scratch_operands = 0 : i64, tpu.core_type = #tpu.core_type<tc>, window_params = [{transform_indices = @transform_0, window_bounds = array<i64: 8, 32>}, {transform_indices = @transform_1, window_bounds = array<i64: 8, 32>}, {transform_indices = @transform_2, window_bounds = array<i64: 8, 32>}, {transform_indices = @transform_3, window_bounds = array<i64: 1, 8, 128>}]} {
    %c0 = arith.constant 0 : index
    %c0_0 = arith.constant 0 : index
    %0 = vector.load %arg2[%c0, %c0_0] : memref<8x32xf32, #tpu.memory_space<vmem>>, vector<8x32xf32>
    %c0_1 = arith.constant 0 : index
    %c0_2 = arith.constant 0 : index
    %1 = vector.load %arg3[%c0_1, %c0_2] : memref<8x32xf32, #tpu.memory_space<vmem>>, vector<8x32xf32>
    %c0_3 = arith.constant 0 : index
    %c0_4 = arith.constant 0 : index
    %2 = vector.load %arg4[%c0_3, %c0_4] : memref<8x32xf32, #tpu.memory_space<vmem>>, vector<8x32xf32>
    %3 = arith.mulf %0, %0 : vector<8x32xf32>
    %cst = arith.constant dense<0.000000e+00> : vector<8xf32>
    %4 = vector.multi_reduction <add>, %3, %cst [1] : vector<8x32xf32> to vector<8xf32>
    %5 = vector.shape_cast %4 : vector<8xf32> to vector<8x1xf32>
    %6 = arith.mulf %1, %1 : vector<8x32xf32>
    %cst_5 = arith.constant dense<0.000000e+00> : vector<8xf32>
    %7 = vector.multi_reduction <add>, %6, %cst_5 [1] : vector<8x32xf32> to vector<8xf32>
    %8 = vector.shape_cast %7 : vector<8xf32> to vector<8x1xf32>
    %9 = arith.mulf %2, %2 : vector<8x32xf32>
    %cst_6 = arith.constant dense<0.000000e+00> : vector<8xf32>
    %10 = vector.multi_reduction <add>, %9, %cst_6 [1] : vector<8x32xf32> to vector<8xf32>
    %11 = vector.shape_cast %10 : vector<8xf32> to vector<8x1xf32>
    %12 = arith.mulf %0, %1 : vector<8x32xf32>
    %cst_7 = arith.constant dense<0.000000e+00> : vector<8xf32>
    %13 = vector.multi_reduction <add>, %12, %cst_7 [1] : vector<8x32xf32> to vector<8xf32>
    %14 = vector.shape_cast %13 : vector<8xf32> to vector<8x1xf32>
    %15 = arith.mulf %0, %2 : vector<8x32xf32>
    %cst_8 = arith.constant dense<0.000000e+00> : vector<8xf32>
    %16 = vector.multi_reduction <add>, %15, %cst_8 [1] : vector<8x32xf32> to vector<8xf32>
    %17 = vector.shape_cast %16 : vector<8xf32> to vector<8x1xf32>
    %cst_9 = arith.constant 6.250000e-02 : f32
    %18 = vector.broadcast %cst_9 : f32 to vector<8x1xf32>
    %19 = arith.mulf %18, %14 : vector<8x1xf32>
    %cst_10 = arith.constant 1.000000e+00 : f32
    %20 = vector.broadcast %cst_10 : f32 to vector<8x1xf32>
    %21 = arith.subf %20, %19 : vector<8x1xf32>
    %cst_11 = arith.constant 3.125000e-02 : f32
    %22 = vector.broadcast %cst_11 : f32 to vector<8x1xf32>
    %23 = arith.mulf %22, %8 : vector<8x1xf32>
    %24 = arith.addf %21, %23 : vector<8x1xf32>
    %cst_12 = arith.constant 3.125000e-02 : f32
    %25 = vector.broadcast %cst_12 : f32 to vector<8x1xf32>
    %26 = arith.mulf %25, %5 : vector<8x1xf32>
    %cst_13 = arith.constant 1.000000e+00 : f32
    %27 = vector.broadcast %cst_13 : f32 to vector<8x1xf32>
    %28 = arith.subf %27, %26 : vector<8x1xf32>
    %cst_14 = arith.constant 6.250000e-02 : f32
    %29 = vector.broadcast %cst_14 : f32 to vector<8x1xf32>
    %30 = arith.mulf %29, %14 : vector<8x1xf32>
    %cst_15 = arith.constant 1.000000e+00 : f32
    %31 = vector.broadcast %cst_15 : f32 to vector<8x1xf32>
    %32 = arith.subf %31, %30 : vector<8x1xf32>
    %cst_16 = arith.constant 9.765625E-4 : f32
    %33 = vector.broadcast %cst_16 : f32 to vector<8x1xf32>
    %34 = arith.mulf %33, %5 : vector<8x1xf32>
    %35 = arith.mulf %34, %8 : vector<8x1xf32>
    %36 = arith.addf %32, %35 : vector<8x1xf32>
    %37 = arith.mulf %24, %24 : vector<8x1xf32>
    %38 = arith.mulf %37, %5 : vector<8x1xf32>
    %cst_17 = arith.constant 2.000000e+00 : f32
    %39 = vector.broadcast %cst_17 : f32 to vector<8x1xf32>
    %40 = arith.mulf %39, %24 : vector<8x1xf32>
    %41 = arith.mulf %40, %28 : vector<8x1xf32>
    %42 = arith.mulf %41, %14 : vector<8x1xf32>
    %43 = arith.subf %38, %42 : vector<8x1xf32>
    %44 = arith.mulf %28, %28 : vector<8x1xf32>
    %45 = arith.mulf %44, %8 : vector<8x1xf32>
    %46 = arith.addf %43, %45 : vector<8x1xf32>
    %cst_18 = arith.constant 1.000000e-15 : f32
    %47 = vector.broadcast %cst_18 : f32 to vector<8x1xf32>
    %48 = arith.maximumf %36, %47 : vector<8x1xf32>
    %49 = tpu.reciprocal %48 : vector<8x1xf32> -> vector<8x1xf32>
    %50 = arith.mulf %46, %49 : vector<8x1xf32>
    %51 = arith.mulf %50, %49 : vector<8x1xf32>
    %cst_19 = arith.constant 1.000000e-15 : f32
    %52 = vector.broadcast %cst_19 : f32 to vector<8x1xf32>
    %53 = arith.maximumf %51, %52 : vector<8x1xf32>
    %54 = math.sqrt %53 : vector<8x1xf32>
    %cst_20 = arith.constant 0.176776692 : f32
    %55 = vector.broadcast %cst_20 : f32 to vector<8x1xf32>
    %56 = arith.mulf %55, %54 : vector<8x1xf32>
    %cst_21 = arith.constant -0.999989986 : f32
    %cst_22 = arith.constant 0.999989986 : f32
    %57 = vector.broadcast %cst_21 : f32 to vector<8x1xf32>
    %58 = arith.maximumf %57, %56 : vector<8x1xf32>
    %59 = vector.broadcast %cst_22 : f32 to vector<8x1xf32>
    %60 = arith.minimumf %59, %58 : vector<8x1xf32>
    %cst_23 = arith.constant 1.000000e+00 : f32
    %61 = vector.broadcast %cst_23 : f32 to vector<8x1xf32>
    %62 = arith.addf %61, %60 : vector<8x1xf32>
    %cst_24 = arith.constant 1.000000e+00 : f32
    %63 = vector.broadcast %cst_24 : f32 to vector<8x1xf32>
    %64 = arith.subf %63, %60 : vector<8x1xf32>
    %65 = arith.divf %62, %64 : vector<8x1xf32>
    %66 = math.log %65 : vector<8x1xf32>
    %cst_25 = arith.constant 5.000000e-01 : f32
    %67 = vector.broadcast %cst_25 : f32 to vector<8x1xf32>
    %68 = arith.mulf %67, %66 : vector<8x1xf32>
    %cst_26 = arith.constant 11.3137083 : f32
    %69 = vector.broadcast %cst_26 : f32 to vector<8x1xf32>
    %70 = arith.mulf %69, %68 : vector<8x1xf32>
    %cst_27 = arith.constant 6.250000e-02 : f32
    %71 = vector.broadcast %cst_27 : f32 to vector<8x1xf32>
    %72 = arith.mulf %71, %17 : vector<8x1xf32>
    %cst_28 = arith.constant 1.000000e+00 : f32
    %73 = vector.broadcast %cst_28 : f32 to vector<8x1xf32>
    %74 = arith.subf %73, %72 : vector<8x1xf32>
    %cst_29 = arith.constant 3.125000e-02 : f32
    %75 = vector.broadcast %cst_29 : f32 to vector<8x1xf32>
    %76 = arith.mulf %75, %11 : vector<8x1xf32>
    %77 = arith.addf %74, %76 : vector<8x1xf32>
    %cst_30 = arith.constant 3.125000e-02 : f32
    %78 = vector.broadcast %cst_30 : f32 to vector<8x1xf32>
    %79 = arith.mulf %78, %5 : vector<8x1xf32>
    %cst_31 = arith.constant 1.000000e+00 : f32
    %80 = vector.broadcast %cst_31 : f32 to vector<8x1xf32>
    %81 = arith.subf %80, %79 : vector<8x1xf32>
    %cst_32 = arith.constant 6.250000e-02 : f32
    %82 = vector.broadcast %cst_32 : f32 to vector<8x1xf32>
    %83 = arith.mulf %82, %17 : vector<8x1xf32>
    %cst_33 = arith.constant 1.000000e+00 : f32
    %84 = vector.broadcast %cst_33 : f32 to vector<8x1xf32>
    %85 = arith.subf %84, %83 : vector<8x1xf32>
    %cst_34 = arith.constant 9.765625E-4 : f32
    %86 = vector.broadcast %cst_34 : f32 to vector<8x1xf32>
    %87 = arith.mulf %86, %5 : vector<8x1xf32>
    %88 = arith.mulf %87, %11 : vector<8x1xf32>
    %89 = arith.addf %85, %88 : vector<8x1xf32>
    %90 = arith.mulf %77, %77 : vector<8x1xf32>
    %91 = arith.mulf %90, %5 : vector<8x1xf32>
    %cst_35 = arith.constant 2.000000e+00 : f32
    %92 = vector.broadcast %cst_35 : f32 to vector<8x1xf32>
    %93 = arith.mulf %92, %77 : vector<8x1xf32>
    %94 = arith.mulf %93, %81 : vector<8x1xf32>
    %95 = arith.mulf %94, %17 : vector<8x1xf32>
    %96 = arith.subf %91, %95 : vector<8x1xf32>
    %97 = arith.mulf %81, %81 : vector<8x1xf32>
    %98 = arith.mulf %97, %11 : vector<8x1xf32>
    %99 = arith.addf %96, %98 : vector<8x1xf32>
    %cst_36 = arith.constant 1.000000e-15 : f32
    %100 = vector.broadcast %cst_36 : f32 to vector<8x1xf32>
    %101 = arith.maximumf %89, %100 : vector<8x1xf32>
    %102 = tpu.reciprocal %101 : vector<8x1xf32> -> vector<8x1xf32>
    %103 = arith.mulf %99, %102 : vector<8x1xf32>
    %104 = arith.mulf %103, %102 : vector<8x1xf32>
    %cst_37 = arith.constant 1.000000e-15 : f32
    %105 = vector.broadcast %cst_37 : f32 to vector<8x1xf32>
    %106 = arith.maximumf %104, %105 : vector<8x1xf32>
    %107 = math.sqrt %106 : vector<8x1xf32>
    %cst_38 = arith.constant 0.176776692 : f32
    %108 = vector.broadcast %cst_38 : f32 to vector<8x1xf32>
    %109 = arith.mulf %108, %107 : vector<8x1xf32>
    %cst_39 = arith.constant -0.999989986 : f32
    %cst_40 = arith.constant 0.999989986 : f32
    %110 = vector.broadcast %cst_39 : f32 to vector<8x1xf32>
    %111 = arith.maximumf %110, %109 : vector<8x1xf32>
    %112 = vector.broadcast %cst_40 : f32 to vector<8x1xf32>
    %113 = arith.minimumf %112, %111 : vector<8x1xf32>
    %cst_41 = arith.constant 1.000000e+00 : f32
    %114 = vector.broadcast %cst_41 : f32 to vector<8x1xf32>
    %115 = arith.addf %114, %113 : vector<8x1xf32>
    %cst_42 = arith.constant 1.000000e+00 : f32
    %116 = vector.broadcast %cst_42 : f32 to vector<8x1xf32>
    %117 = arith.subf %116, %113 : vector<8x1xf32>
    %118 = arith.divf %115, %117 : vector<8x1xf32>
    %119 = math.log %118 : vector<8x1xf32>
    %cst_43 = arith.constant 5.000000e-01 : f32
    %120 = vector.broadcast %cst_43 : f32 to vector<8x1xf32>
    %121 = arith.mulf %120, %119 : vector<8x1xf32>
    %cst_44 = arith.constant 11.3137083 : f32
    %122 = vector.broadcast %cst_44 : f32 to vector<8x1xf32>
    %123 = arith.mulf %122, %121 : vector<8x1xf32>
    %cst_45 = arith.constant 1.000000e-15 : f32
    %124 = vector.broadcast %cst_45 : f32 to vector<8x1xf32>
    %125 = arith.maximumf %5, %124 : vector<8x1xf32>
    %126 = math.sqrt %125 : vector<8x1xf32>
    %cst_46 = arith.constant 0.176776692 : f32
    %127 = vector.broadcast %cst_46 : f32 to vector<8x1xf32>
    %128 = arith.mulf %127, %126 : vector<8x1xf32>
    %cst_47 = arith.constant -0.999989986 : f32
    %cst_48 = arith.constant 0.999989986 : f32
    %129 = vector.broadcast %cst_47 : f32 to vector<8x1xf32>
    %130 = arith.maximumf %129, %128 : vector<8x1xf32>
    %131 = vector.broadcast %cst_48 : f32 to vector<8x1xf32>
    %132 = arith.minimumf %131, %130 : vector<8x1xf32>
    %cst_49 = arith.constant 1.000000e+00 : f32
    %133 = vector.broadcast %cst_49 : f32 to vector<8x1xf32>
    %134 = arith.addf %133, %132 : vector<8x1xf32>
    %cst_50 = arith.constant 1.000000e+00 : f32
    %135 = vector.broadcast %cst_50 : f32 to vector<8x1xf32>
    %136 = arith.subf %135, %132 : vector<8x1xf32>
    %137 = arith.divf %134, %136 : vector<8x1xf32>
    %138 = math.log %137 : vector<8x1xf32>
    %cst_51 = arith.constant 5.000000e-01 : f32
    %139 = vector.broadcast %cst_51 : f32 to vector<8x1xf32>
    %140 = arith.mulf %139, %138 : vector<8x1xf32>
    %cst_52 = arith.constant 11.3137083 : f32
    %141 = vector.broadcast %cst_52 : f32 to vector<8x1xf32>
    %142 = arith.mulf %141, %140 : vector<8x1xf32>
    %cst_53 = arith.constant 1.000000e-15 : f32
    %143 = vector.broadcast %cst_53 : f32 to vector<8x1xf32>
    %144 = arith.maximumf %8, %143 : vector<8x1xf32>
    %145 = math.sqrt %144 : vector<8x1xf32>
    %cst_54 = arith.constant 0.176776692 : f32
    %146 = vector.broadcast %cst_54 : f32 to vector<8x1xf32>
    %147 = arith.mulf %146, %145 : vector<8x1xf32>
    %cst_55 = arith.constant -0.999989986 : f32
    %cst_56 = arith.constant 0.999989986 : f32
    %148 = vector.broadcast %cst_55 : f32 to vector<8x1xf32>
    %149 = arith.maximumf %148, %147 : vector<8x1xf32>
    %150 = vector.broadcast %cst_56 : f32 to vector<8x1xf32>
    %151 = arith.minimumf %150, %149 : vector<8x1xf32>
    %cst_57 = arith.constant 1.000000e+00 : f32
    %152 = vector.broadcast %cst_57 : f32 to vector<8x1xf32>
    %153 = arith.addf %152, %151 : vector<8x1xf32>
    %cst_58 = arith.constant 1.000000e+00 : f32
    %154 = vector.broadcast %cst_58 : f32 to vector<8x1xf32>
    %155 = arith.subf %154, %151 : vector<8x1xf32>
    %156 = arith.divf %153, %155 : vector<8x1xf32>
    %157 = math.log %156 : vector<8x1xf32>
    %cst_59 = arith.constant 5.000000e-01 : f32
    %158 = vector.broadcast %cst_59 : f32 to vector<8x1xf32>
    %159 = arith.mulf %158, %157 : vector<8x1xf32>
    %cst_60 = arith.constant 11.3137083 : f32
    %160 = vector.broadcast %cst_60 : f32 to vector<8x1xf32>
    %161 = arith.mulf %160, %159 : vector<8x1xf32>
    %162 = arith.subf %70, %123 : vector<8x1xf32>
    %cst_61 = arith.constant 5.000000e+00 : f32
    %163 = vector.broadcast %cst_61 : f32 to vector<8x1xf32>
    %164 = arith.addf %162, %163 : vector<8x1xf32>
    %cst_62 = arith.constant 0.000000e+00 : f32
    %165 = vector.broadcast %cst_62 : f32 to vector<8x1xf32>
    %166 = arith.maximumf %164, %165 : vector<8x1xf32>
    %cst_63 = arith.constant 5.000000e-01 : f32
    %167 = vector.broadcast %cst_63 : f32 to vector<8x1xf32>
    %168 = arith.addf %167, %161 : vector<8x1xf32>
    %169 = arith.subf %168, %142 : vector<8x1xf32>
    %cst_64 = arith.constant 0.000000e+00 : f32
    %170 = vector.broadcast %cst_64 : f32 to vector<8x1xf32>
    %171 = arith.maximumf %169, %170 : vector<8x1xf32>
    %c8_i32 = arith.constant 8 : i32
    %172 = arith.muli %arg0, %c8_i32 : i32
    %173 = tpu.iota {dimensions = array<i32: 0>} : vector<8x1xi32>
    %174 = vector.broadcast %172 : i32 to vector<8x1xi32>
    %175 = arith.addi %174, %173 : vector<8x1xi32>
    %c0_65 = arith.constant 0 : index
    %176 = memref.load %arg1[%c0_65] : memref<1xi32, #tpu.memory_space<smem>>
    %177 = vector.broadcast %176 : i32 to vector<8x1xi32>
    %178 = arith.cmpi slt, %175, %177 : vector<8x1xi32>
    %cst_66 = arith.constant 0.000000e+00 : f32
    %179 = vector.broadcast %cst_66 : f32 to vector<8x1xf32>
    %180 = arith.select %178, %166, %179 : vector<8x1xi1>, vector<8x1xf32>
    %181 = vector.shape_cast %180 : vector<8x1xf32> to vector<1x8x1xf32>
    %cst_67 = arith.constant dense<0.000000e+00> : vector<1xf32>
    %182 = vector.multi_reduction <add>, %181, %cst_67 [1, 2] : vector<1x8x1xf32> to vector<1xf32>
    %183 = vector.shape_cast %182 : vector<1xf32> to vector<1x1x1xf32>
    %184 = vector.extract %183[0, 0, 0] : f32 from vector<1x1x1xf32>
    %cst_68 = arith.constant 0.000000e+00 : f32
    %185 = vector.broadcast %cst_68 : f32 to vector<8x1xf32>
    %186 = arith.select %178, %171, %185 : vector<8x1xi1>, vector<8x1xf32>
    %187 = vector.shape_cast %186 : vector<8x1xf32> to vector<1x8x1xf32>
    %cst_69 = arith.constant dense<0.000000e+00> : vector<1xf32>
    %188 = vector.multi_reduction <add>, %187, %cst_69 [1, 2] : vector<1x8x1xf32> to vector<1xf32>
    %189 = vector.shape_cast %188 : vector<1xf32> to vector<1x1x1xf32>
    %190 = vector.extract %189[0, 0, 0] : f32 from vector<1x1x1xf32>
    %191 = tpu.iota {dimensions = array<i32: 1>} : vector<1x8x128xi32>
    %c0_i32 = arith.constant 0 : i32
    %192 = vector.broadcast %c0_i32 : i32 to vector<1x8x128xi32>
    %193 = arith.cmpi eq, %191, %192 : vector<1x8x128xi32>
    %c1_i32 = arith.constant 1 : i32
    %194 = vector.broadcast %c1_i32 : i32 to vector<1x8x128xi32>
    %195 = arith.cmpi eq, %191, %194 : vector<1x8x128xi32>
    %cst_70 = arith.constant 0.000000e+00 : f32
    %196 = vector.broadcast %190 : f32 to vector<1x8x128xf32>
    %197 = vector.broadcast %cst_70 : f32 to vector<1x8x128xf32>
    %198 = arith.select %195, %196, %197 : vector<1x8x128xi1>, vector<1x8x128xf32>
    %199 = vector.broadcast %184 : f32 to vector<1x8x128xf32>
    %200 = arith.select %193, %199, %198 : vector<1x8x128xi1>, vector<1x8x128xf32>
    %c0_71 = arith.constant 0 : index
    %c0_72 = arith.constant 0 : index
    %c0_73 = arith.constant 0 : index
    %201 = vector.load %arg5[%c0_71, %c0_72, %c0_73] : memref<1x8x128xf32, #tpu.memory_space<vmem>>, vector<1x8x128xf32>
    tpu.vector_store %arg5[%c0_71, %c0_72, %c0_73], %200 {strides = array<i32>} : memref<1x8x128xf32, #tpu.memory_space<vmem>>, vector<1x8x128xf32>,
    return
  }
  func.func @transform_0(%arg0: i32, %arg1: memref<1xi32, #tpu.memory_space<smem>>) -> (i32, i32) {
    %c0_i32 = arith.constant 0 : i32
    %c0_i32_0 = arith.constant 0 : i32
    return %arg0, %c0_i32 : i32, i32
  }
  func.func @transform_1(%arg0: i32, %arg1: memref<1xi32, #tpu.memory_space<smem>>) -> (i32, i32) {
    %c0_i32 = arith.constant 0 : i32
    %c0_i32_0 = arith.constant 0 : i32
    return %arg0, %c0_i32 : i32, i32
  }
  func.func @transform_2(%arg0: i32, %arg1: memref<1xi32, #tpu.memory_space<smem>>) -> (i32, i32) {
    %c0_i32 = arith.constant 0 : i32
    %c0_i32_0 = arith.constant 0 : i32
    return %arg0, %c0_i32 : i32, i32
  }
  func.func @transform_3(%arg0: i32, %arg1: memref<1xi32, #tpu.memory_space<smem>>) -> (i32, i32, i32) {
    %c0_i32 = arith.constant 0 : i32
    %c0_i32_0 = arith.constant 0 : i32
    %c0_i32_1 = arith.constant 0 : i32
    return %arg0, %c0_i32, %c0_i32_0 : i32, i32, i32
  }
}

</mosaic_0001>

<llo_original>
// kernel: tpu_custom_call.1
$region0: #{tpu_custom_call.1}
  #allocation0 [shape = 'u32[]', space=smem, size = 0x4, offset = 0x4, fixed_abs, tag = 'smem constant byte address 0x4 - core index']
  #allocation1 [shape = 'u32[144,128]{1,0:T(1,128)}', space=vmem, size = 0x12000, scoped, tag = 'internal scratch']
  #allocation2 [shape = 's32[1]{0}', space=sflag, size = 0x4, scoped, tag = 'scoped memory for tpu_custom_call.1']
  #allocation3 [shape = 's32[1]{0:T(128)S(6)}', space=smem, size = 0x200, scoped, tag = 'prefetched SMEM operand 0']
  %s0 = inlined_call_operand.<no memory space> [shape: s32[1], index: 0, kind: input, shape index: {}]
  %s1 = inlined_call_operand.hbm [shape: f32[12,32], index: 1, kind: input, shape index: {}]
  %s2 = inlined_call_operand.hbm [shape: f32[12,32], index: 2, kind: input, shape index: {}]
  %s3 = inlined_call_operand.hbm [shape: f32[12,32], index: 3, kind: input, shape index: {}]
  %s4 = inlined_call_operand.hbm [shape: f32[2,8,128], index: 4, kind: output, shape index: {}]
  %s5 = sld [smem:[#allocation0]]
  $region57: #{tpu_custom_call.1} parent=0
    _
  %s7 = ssub.s32 1, %s5
  %s8 = scalar_select 0, %s7, %s5
  %9 = sst [smem:[#allocation3]] %s0
  $region1: #{tpu_custom_call.1} parent=0
    #allocation4 [shape = 'u8[8192]{0}', space=vmem, size = 0x2000, scoped, tag = 'input window, operand 1']
    #allocation5 [shape = 's32[2]{0}', space=sflag, size = 0x8, scoped, tag = 'scoped memory for tpu_custom_call.1']
    #allocation6 [shape = 's32[2]{0}', space=sflag, size = 0x8, scoped, tag = 'scoped memory for tpu_custom_call.1']
    #allocation7 [shape = 'u8[8192]{0}', space=vmem, size = 0x2000, scoped, tag = 'input window, operand 2']
    #allocation8 [shape = 's32[2]{0}', space=sflag, size = 0x8, scoped, tag = 'scoped memory for tpu_custom_call.1']
    #allocation9 [shape = 'u8[8192]{0}', space=vmem, size = 0x2000, scoped, tag = 'input window, operand 3']
    #allocation10 [shape = 'u8[8192]{0}', space=vmem, size = 0x2000, scoped, tag = 'output window, operand 0']
    %10 = vsyncpa [#allocation5], 0
    %s11 = scalar_lea.sflag [#allocation5], 1
    %12 = vsyncpa %s11, 0
    %13 = vsyncpa [#allocation8], 0
    %s14 = scalar_lea.sflag [#allocation8], 1
    %15 = vsyncpa %s14, 0
    %16 = vsyncpa [#allocation6], 0
    %s17 = scalar_lea.sflag [#allocation6], 1
    %18 = vsyncpa %s17, 0
    loop: start=0, step=1, limit=4
    $region2: #{tpu_custom_call.1} parent=1 // loop_pre_header
      _
    $region3: #{tpu_custom_call.1} parent=1 // loop_header
      %s20 = sphi 0, %s24
      %p21 = scmp.ge.s32.totalorder %s20, 4
      %s30 = sphi 0, %s32
      %s33 = sphi 0, %s30
      %s34 = sphi 0, %s33
      %s50 = sphi 0, %s34
      %s56 = sphi 0, %s58
      %s59 = sphi 0, %s56
      %s60 = sphi 0, %s59
      %s76 = sphi 0, %s60
      %s82 = sphi 0, %s84
      %s85 = sphi 0, %s82
      %s86 = sphi 0, %s85
      %s102 = sphi 0, %s86
      %s108 = sphi 0, %s110
      %s111 = sphi 0, %s108
      %s112 = sphi 0, %s111
      %s128 = sphi 0, %s112
    $region4: #{tpu_custom_call.1} parent=1 // loop_header_branch
      %23 = sbr.rel (%p21) target = $region8
    $region5: #{tpu_custom_call.1} parent=1 // loop_body
      %s25 = ssub.s32 %s20, 1
      %s26 = ssub.s32 %s20, 2
      %s27 = sadd.s32 %s20, 1
      %s28 = ssub.s32 %s20, %s27
      %p29 = scmp.eq.s32.totalorder %s28, 0
      %s31 = sadd.s32 %s30, 1
      %s32 = scalar_select %p29, %s30, %s31
      %p35 = pneg %p29
      %p36 = scmp.eq.s32.totalorder %s20, 1
      %p37 = por %p35, %p36
      %p38 = scmp.ne.s32.totalorder %s30, %s33
      %p39 = scmp.eq.s32.totalorder %s20, 0
      %p40 = por %p38, %p39
      %p41 = scmp.ne.s32.totalorder %s30, %s33
      %p42 = scmp.eq.s32.totalorder %s25, 1
      %p43 = por %p41, %p42
      %p44 = scmp.ne.s32.totalorder %s33, %s34
      %p45 = scmp.eq.s32.totalorder %s25, 0
      %p46 = por %p44, %p45
      %p47 = scmp.ne.s32.totalorder %s33, %s34
      %p48 = scmp.eq.s32.totalorder %s26, 1
      %p49 = por %p47, %p48
      %p51 = scmp.ne.s32.totalorder %s34, %s50
      %p52 = scmp.eq.s32.totalorder %s26, 0
      %p53 = por %p51, %p52
      %s54 = ssub.s32 %s20, %s27
      %p55 = scmp.eq.s32.totalorder %s54, 0
      %s57 = sadd.s32 %s56, 1
      %s58 = scalar_select %p55, %s56, %s57
      %p61 = pneg %p55
      %p62 = scmp.eq.s32.totalorder %s20, 1
      %p63 = por %p61, %p62
      %p64 = scmp.ne.s32.totalorder %s56, %s59
      %p65 = scmp.eq.s32.totalorder %s20, 0
      %p66 = por %p64, %p65
      %p67 = scmp.ne.s32.totalorder %s56, %s59
      %p68 = scmp.eq.s32.totalorder %s25, 1
      %p69 = por %p67, %p68
      %p70 = scmp.ne.s32.totalorder %s59, %s60
      %p71 = scmp.eq.s32.totalorder %s25, 0
      %p72 = por %p70, %p71
      %p73 = scmp.ne.s32.totalorder %s59, %s60
      %p74 = scmp.eq.s32.totalorder %s26, 1
      %p75 = por %p73, %p74
      %p77 = scmp.ne.s32.totalorder %s60, %s76
      %p78 = scmp.eq.s32.totalorder %s26, 0
      %p79 = por %p77, %p78
      %s80 = ssub.s32 %s20, %s27
      %p81 = scmp.eq.s32.totalorder %s80, 0
      %s83 = sadd.s32 %s82, 1
      %s84 = scalar_select %p81, %s82, %s83
      %p87 = pneg %p81
      %p88 = scmp.eq.s32.totalorder %s20, 1
      %p89 = por %p87, %p88
      %p90 = scmp.ne.s32.totalorder %s82, %s85
      %p91 = scmp.eq.s32.totalorder %s20, 0
      %p92 = por %p90, %p91
      %p93 = scmp.ne.s32.totalorder %s82, %s85
      %p94 = scmp.eq.s32.totalorder %s25, 1
      %p95 = por %p93, %p94
      %p96 = scmp.ne.s32.totalorder %s85, %s86
      %p97 = scmp.eq.s32.totalorder %s25, 0
      %p98 = por %p96, %p97
      %p99 = scmp.ne.s32.totalorder %s85, %s86
      %p100 = scmp.eq.s32.totalorder %s26, 1
      %p101 = por %p99, %p100
      %p103 = scmp.ne.s32.totalorder %s86, %s102
      %p104 = scmp.eq.s32.totalorder %s26, 0
      %p105 = por %p103, %p104
      %s106 = ssub.s32 %s20, %s27
      %p107 = scmp.eq.s32.totalorder %s106, 0
      %s109 = sadd.s32 %s108, 1
      %s110 = scalar_select %p107, %s108, %s109
      %p113 = pneg %p107
      %p114 = scmp.eq.s32.totalorder %s20, 1
      %p115 = por %p113, %p114
      %p116 = scmp.ne.s32.totalorder %s108, %s111
      %p117 = scmp.eq.s32.totalorder %s20, 0
      %p118 = por %p116, %p117
      %p119 = scmp.ne.s32.totalorder %s108, %s111
      %p120 = scmp.eq.s32.totalorder %s25, 1
      %p121 = por %p119, %p120
      %p122 = scmp.ne.s32.totalorder %s111, %s112
      %p123 = scmp.eq.s32.totalorder %s25, 0
      %p124 = por %p122, %p123
      %p125 = scmp.ne.s32.totalorder %s111, %s112
      %p126 = scmp.eq.s32.totalorder %s26, 1
      %p127 = por %p125, %p126
      %p129 = scmp.ne.s32.totalorder %s112, %s128
      %p130 = scmp.eq.s32.totalorder %s26, 0
      %p131 = por %p129, %p130
      %p132 = scmp.le.s32.totalorder 1, %s20
      %p133 = scmp.lt.s32.totalorder %s20, 3
      %p134 = pnand %p132, %p133
      %p135 = pneg %p134
      // Predicated region
      $region9: #{tpu_custom_call.1} parent=5 // pred_check
        _
      $region10: #{tpu_custom_call.1} parent=5 // pred_check_branch
        %137 = sbr.rel (%p134) target = $region12
      $region11: #{tpu_custom_call.1} parent=5 // pred_region
        %s138 = ssub.s32 %s20, 1
      $region12: #{tpu_custom_call.1} parent=5 // pred_fallthru
        _
      %p139 = scmp.lt.s32.totalorder %s20, 2
      // Predicated region
      $region13: #{tpu_custom_call.1} parent=5 // pred_check
        %p140 = pneg %p139
      $region14: #{tpu_custom_call.1} parent=5 // pred_check_branch
        %142 = sbr.rel (%p140) target = $region16
      $region15: #{tpu_custom_call.1} parent=5 // pred_region
        // Predicated region
        $region17: #{tpu_custom_call.1} parent=15 // pred_check
          %p143 = pneg %p40
        $region18: #{tpu_custom_call.1} parent=15 // pred_check_branch
          %145 = sbr.rel (%p143) target = $region20
        $region19: #{tpu_custom_call.1} parent=15 // pred_region
          %s146 = sand.u32 %s30, 1
          %s147 = scalar_lea.sflag [#allocation5], %s146
          %s148 = sand.u32 %s30, 1
          %s149 = smul.addr %s148, 8
          %s150 = scalar_lea.vmem [#allocation4], %s149
          %s152 = ssub.s32 128, 128
          %153 = vsyncadd %s147, %s152
          %s154 = smul.addr %s20, 128
          %s155 = scalar_lea.hbm %s1, %s154
          %s157 = sshll.u32 %s150, 4
          %s158 = int_to_ptr.vmem [resolvable:$true] %s157
          %160 = dma.hbm_to_vmem [thread:$0]  %s155, 128, %s158, %s147
        $region20: #{tpu_custom_call.1} parent=15 // pred_fallthru
          _
        // Predicated region
        $region21: #{tpu_custom_call.1} parent=15 // pred_check
          %p161 = pneg %p66
        $region22: #{tpu_custom_call.1} parent=15 // pred_check_branch
          %163 = sbr.rel (%p161) target = $region24
        $region23: #{tpu_custom_call.1} parent=15 // pred_region
          %s164 = sand.u32 %s20, 1
          %s165 = scalar_lea.sflag [#allocation8], %s164
          %s166 = sand.u32 %s56, 1
          %s167 = smul.addr %s166, 8
          %s168 = scalar_lea.vmem [#allocation7], %s167
          %s170 = ssub.s32 128, 128
          %171 = vsyncadd %s165, %s170
          %s172 = smul.addr %s20, 128
          %s173 = scalar_lea.hbm %s2, %s172
          %s175 = sshll.u32 %s168, 4
          %s176 = int_to_ptr.vmem [resolvable:$true] %s175
          %178 = dma.hbm_to_vmem [thread:$0]  %s173, 128, %s176, %s165
        $region24: #{tpu_custom_call.1} parent=15 // pred_fallthru
          _
        // Predicated region
        $region25: #{tpu_custom_call.1} parent=15 // pred_check
          %p179 = pneg %p92
        $region26: #{tpu_custom_call.1} parent=15 // pred_check_branch
          %181 = sbr.rel (%p179) target = $region28
        $region27: #{tpu_custom_call.1} parent=15 // pred_region
          %s182 = sand.u32 %s20, 1
          %s183 = scalar_lea.sflag [#allocation8], %s182
          %s184 = sand.u32 %s82, 1
          %s185 = smul.addr %s184, 8
          %s186 = scalar_lea.vmem [#allocation9], %s185
          %s188 = ssub.s32 128, 128
          %189 = vsyncadd %s183, %s188
          %s190 = smul.addr %s20, 128
          %s191 = scalar_lea.hbm %s3, %s190
          %s193 = sshll.u32 %s186, 4
          %s194 = int_to_ptr.vmem [resolvable:$true] %s193
          %196 = dma.hbm_to_vmem [thread:$0]  %s191, 128, %s194, %s183
        $region28: #{tpu_custom_call.1} parent=15 // pred_fallthru
          _
      $region16: #{tpu_custom_call.1} parent=5 // pred_fallthru
        _
      %p197 = scmp.le.s32.totalorder 1, %s20
      %p198 = scmp.lt.s32.totalorder %s20, 3
      %p199 = pnand %p197, %p198
      %p200 = pneg %p199
      // Predicated region
      $region29: #{tpu_custom_call.1} parent=5 // pred_check
        _
      $region30: #{tpu_custom_call.1} parent=5 // pred_check_branch
        %202 = sbr.rel (%p199) target = $region32
      $region31: #{tpu_custom_call.1} parent=5 // pred_region
        %s203 = ssub.s32 %s20, 1
        %s204 = sand.u32 %s33, 1
        %s205 = scalar_lea.sflag [#allocation5], %s204
        %s206 = sand.u32 %s33, 1
        %s207 = smul.addr %s206, 8
        %s208 = scalar_lea.vmem [#allocation4], %s207
        // Predicated region
        $region33: #{tpu_custom_call.1} parent=31 // pred_check
          %p209 = pneg %p46
        $region34: #{tpu_custom_call.1} parent=31 // pred_check_branch
          %211 = sbr.rel (%p209) target = $region36
        $region35: #{tpu_custom_call.1} parent=31 // pred_region
          %212 = dma.done %s205, 128
        $region36: #{tpu_custom_call.1} parent=31 // pred_fallthru
          _
        %s213 = sand.u32 %s25, 1
        %s214 = scalar_lea.sflag [#allocation8], %s213
        %s215 = sand.u32 %s59, 1
        %s216 = smul.addr %s215, 8
        %s217 = scalar_lea.vmem [#allocation7], %s216
        // Predicated region
        $region37: #{tpu_custom_call.1} parent=31 // pred_check
          %p218 = pneg %p72
        $region38: #{tpu_custom_call.1} parent=31 // pred_check_branch
          %220 = sbr.rel (%p218) target = $region40
        $region39: #{tpu_custom_call.1} parent=31 // pred_region
          %221 = dma.done %s214, 128
        $region40: #{tpu_custom_call.1} parent=31 // pred_fallthru
          _
        %s222 = sand.u32 %s25, 1
        %s223 = scalar_lea.sflag [#allocation8], %s222
        %s224 = sand.u32 %s85, 1
        %s225 = smul.addr %s224, 8
        %s226 = scalar_lea.vmem [#allocation9], %s225
        // Predicated region
        $region41: #{tpu_custom_call.1} parent=31 // pred_check
          %p227 = pneg %p98
        $region42: #{tpu_custom_call.1} parent=31 // pred_check_branch
          %229 = sbr.rel (%p227) target = $region44
        $region43: #{tpu_custom_call.1} parent=31 // pred_region
          %230 = dma.done %s223, 128
        $region44: #{tpu_custom_call.1} parent=31 // pred_fallthru
          _
        %s231 = sand.u32 %s33, 1
        %s232 = scalar_lea.sflag [#allocation5], %s231
        %s233 = sand.u32 %s33, 1
        %s234 = smul.addr %s233, 8
        %s235 = scalar_lea.vmem [#allocation4], %s234
        %p236 = pneg %p46
        %p237 = pneg %p43
        %s238 = sand.u32 %s25, 1
        %s239 = scalar_lea.sflag [#allocation8], %s238
        %s240 = sand.u32 %s59, 1
        %s241 = smul.addr %s240, 8
        %s242 = scalar_lea.vmem [#allocation7], %s241
        %p243 = pneg %p72
        %p244 = pneg %p69
        %s245 = sand.u32 %s25, 1
        %s246 = scalar_lea.sflag [#allocation8], %s245
        %s247 = sand.u32 %s85, 1
        %s248 = smul.addr %s247, 8
        %s249 = scalar_lea.vmem [#allocation9], %s248
        %p250 = pneg %p98
        %p251 = pneg %p95
        %p252 = pneg %p124
        %p253 = pneg %p121
        %s254 = sand.u32 %s111, 1
        %s255 = scalar_lea.sflag [#allocation6], %s254
        %s256 = sand.u32 %s111, 1
        %s257 = smul.addr %s256, 8
        %s258 = scalar_lea.vmem [#allocation10], %s257
        %v259 = vld [vmem:[%s208] sm:$0xff]
        %v260 = vld [vmem:[%s217] sm:$0xff]
        %v261 = vld [vmem:[%s226] sm:$0xff]
        %v262 = vmul.f32 %v259, %v259
        %vm263 = vcmask 261120
        %v264 = vsel %vm263, %v262, 0.0
        %265 = vadd.xlane.f32.xlu0 %v264
        %v266 = vpop.xlane.xlu0 %265
        %v267 = vmul.f32 %v260, %v260
        %v268 = vsel %vm263, %v267, 0.0
        %269 = vadd.xlane.f32.xlu0 %v268
        %v270 = vpop.xlane.xlu0 %269
        %v271 = vmul.f32 %v261, %v261
        %v272 = vsel %vm263, %v271, 0.0
        %273 = vadd.xlane.f32.xlu0 %v272
        %v274 = vpop.xlane.xlu0 %273
        %v275 = vmul.f32 %v259, %v260
        %v276 = vsel %vm263, %v275, 0.0
        %277 = vadd.xlane.f32.xlu0 %v276
        %v278 = vpop.xlane.xlu0 %277
        %v279 = vmul.f32 %v259, %v261
        %v280 = vsel %vm263, %v279, 0.0
        %281 = vadd.xlane.f32.xlu0 %v280
        %v282 = vpop.xlane.xlu0 %281
        %v283 = vmul.f32 %v278, 0.0625
        %v284 = vsub.f32 1.0, %v283
        %v285 = vmul.f32 %v270, 0.03125
        %v286 = vadd.f32 %v284, %v285
        %v287 = vmul.f32 %v266, 0.03125
        %v288 = vsub.f32 1.0, %v287
        %v289 = vmul.f32 %v266, 0.0009765625
        %v290 = vmul.f32 %v289, %v270
        %v291 = vadd.f32 %v284, %v290
        %v292 = vmul.f32 %v286, %v286
        %v293 = vmul.f32 %v292, %v266
        %v294 = vmul.f32 %v286, 2.0
        %v295 = vmul.f32 %v294, %v288
        %v296 = vmul.f32 %v295, %v278
        %v297 = vsub.f32 %v293, %v296
        %v298 = vmul.f32 %v288, %v288
        %v299 = vmul.f32 %v298, %v270
        %v300 = vadd.f32 %v297, %v299
        %v301 = vmax.f32 %v291, 1e-15
        %v302 = vrcp.pop %v301
        %v303 = vmul.f32 %v300, %v302
        %v304 = vmul.f32 %v303, %v302
        %v305 = vmax.f32 %v304, 1e-15
        %v306 = vrsqrt.pop %v305
        %v307 = vmul.f32 %v305, %v306
        %vm308 = vcmp.eq.f32.partialorder %v305, inf
        %v309 = vsel %vm308, %v305, %v307
        %vm310 = vcmp.eq.f32.partialorder %v305, 0.0
        %v311 = vand.u32 %v305, 2147483648
        %v312 = vsel %vm310, %v311, %v309
        %v313 = vmul.f32 %v312, 0.17677669
        %v314 = vmax.f32 %v313, -0.99999
        %v315 = vmin.f32 %v314, 0.99999
        %v316 = vadd.f32 %v315, 1.0
        %v317 = vsub.f32 1.0, %v315
        %v318 = vrcp.pop %v317
        %v319 = vmul.f32 %v316, %v318
        %v320 = vlog2.pop %v319
        %v321 = vmul.f32 %v320, 0.6931472
        %v322 = vmul.f32 %v321, 0.5
        %v323 = vmul.f32 %v322, 11.313708
        %v324 = vmul.f32 %v282, 0.0625
        %v325 = vsub.f32 1.0, %v324
        %v326 = vmul.f32 %v274, 0.03125
        %v327 = vadd.f32 %v325, %v326
        %v328 = vmul.f32 %v289, %v274
        %v329 = vadd.f32 %v325, %v328
        %v330 = vmul.f32 %v327, %v327
        %v331 = vmul.f32 %v330, %v266
        %v332 = vmul.f32 %v327, 2.0
        %v333 = vmul.f32 %v332, %v288
        %v334 = vmul.f32 %v333, %v282
        %v335 = vsub.f32 %v331, %v334
        %v336 = vmul.f32 %v298, %v274
        %v337 = vadd.f32 %v335, %v336
        %v338 = vmax.f32 %v329, 1e-15
        %v339 = vrcp.pop %v338
        %v340 = vmul.f32 %v337, %v339
        %v341 = vmul.f32 %v340, %v339
        %v342 = vmax.f32 %v341, 1e-15
        %v343 = vrsqrt.pop %v342
        %v344 = vmul.f32 %v342, %v343
        %vm345 = vcmp.eq.f32.partialorder %v342, inf
        %v346 = vsel %vm345, %v342, %v344
        %vm347 = vcmp.eq.f32.partialorder %v342, 0.0
        %v348 = vand.u32 %v342, 2147483648
        %v349 = vsel %vm347, %v348, %v346
        %v350 = vmul.f32 %v349, 0.17677669
        %v351 = vmax.f32 %v350, -0.99999
        %v352 = vmin.f32 %v351, 0.99999
        %v353 = vadd.f32 %v352, 1.0
        %v354 = vsub.f32 1.0, %v352
        %v355 = vrcp.pop %v354
        %v356 = vmul.f32 %v353, %v355
        %v357 = vlog2.pop %v356
        %v358 = vmul.f32 %v357, 0.6931472
        %v359 = vmul.f32 %v358, 0.5
        %v360 = vmul.f32 %v359, 11.313708
        %v361 = vmax.f32 %v266, 1e-15
        %v362 = vrsqrt.pop %v361
        %v363 = vmul.f32 %v361, %v362
        %vm364 = vcmp.eq.f32.partialorder %v361, inf
        %v365 = vsel %vm364, %v361, %v363
        %vm366 = vcmp.eq.f32.partialorder %v361, 0.0
        %v367 = vand.u32 %v361, 2147483648
        %v368 = vsel %vm366, %v367, %v365
        %v369 = vmul.f32 %v368, 0.17677669
        %v370 = vmax.f32 %v369, -0.99999
        %v371 = vmin.f32 %v370, 0.99999
        %v372 = vadd.f32 %v371, 1.0
        %v373 = vsub.f32 1.0, %v371
        %v374 = vrcp.pop %v373
        %v375 = vmul.f32 %v372, %v374
        %v376 = vlog2.pop %v375
        %v377 = vmul.f32 %v376, 0.6931472
        %v378 = vmul.f32 %v377, 0.5
        %v379 = vmul.f32 %v378, 11.313708
        %v380 = vmax.f32 %v270, 1e-15
        %v381 = vrsqrt.pop %v380
        %v382 = vmul.f32 %v380, %v381
        %vm383 = vcmp.eq.f32.partialorder %v380, inf
        %v384 = vsel %vm383, %v380, %v382
        %vm385 = vcmp.eq.f32.partialorder %v380, 0.0
        %v386 = vand.u32 %v380, 2147483648
        %v387 = vsel %vm385, %v386, %v384
        %v388 = vmul.f32 %v387, 0.17677669
        %v389 = vmax.f32 %v388, -0.99999
        %v390 = vmin.f32 %v389, 0.99999
        %v391 = vadd.f32 %v390, 1.0
        %v392 = vsub.f32 1.0, %v390
        %v393 = vrcp.pop %v392
        %v394 = vmul.f32 %v391, %v393
        %v395 = vlog2.pop %v394
        %v396 = vmul.f32 %v395, 0.6931472
        %v397 = vmul.f32 %v396, 0.5
        %v398 = vmul.f32 %v397, 11.313708
        %v399 = vsub.f32 %v323, %v360
        %v400 = vadd.f32 %v399, 5.0
        %v401 = vmax.f32 %v400, 0.0
        %v402 = vadd.f32 %v398, 0.5
        %v403 = vsub.f32 %v402, %v379
        %v404 = vmax.f32 %v403, 0.0
        %s405 = smul.u32 %s25, 8
        %v406 = vlaneseq
        %v407 = vshrl.u32 %v406, 7
        %v408 = vstv %s405
        %v409 = vadd.s32 %v408, %v407
        %s410 = sld [smem:[#allocation3]]
        %v411 = vstv %s410
        %vm412 = vcmp.lt.s32.totalorder %v409, %v411
        %v413 = vsel %vm412, %v401, 0.0
        %vm414 = vcmask 7168
        %v415 = vsel %vm414, %v413, 0.0
        %416 = vadd.xlane.f32.xlu0 %v415
        %v417 = vpop.xlane.xlu0 %416
        %v418 = vrot.slane %v417, 4
        %v419 = vadd.f32 %v417, %v418
        %v420 = vrot.slane %v419, 2
        %v421 = vadd.f32 %v419, %v420
        %v422 = vrot.slane %v421, 1
        %v423 = vadd.f32 %v421, %v422
        %s424 = vtos %v423
        %v425 = vsel %vm412, %v404, 0.0
        %v426 = vsel %vm414, %v425, 0.0
        %427 = vadd.xlane.f32.xlu0 %v426
        %v428 = vpop.xlane.xlu0 %427
        %v429 = vrot.slane %v428, 4
        %v430 = vadd.f32 %v428, %v429
        %v431 = vrot.slane %v430, 2
        %v432 = vadd.f32 %v430, %v431
        %v433 = vrot.slane %v432, 1
        %v434 = vadd.f32 %v432, %v433
        %s435 = vtos %v434
        %vm436 = vcmp.eq.s32.totalorder %v407, 0
        %vm437 = vcmp.eq.s32.totalorder %v407, 1
        %v438 = vstv %s435
        %v439 = vsel %vm437, %v438, 0.0
        %v440 = vstv %s424
        %v441 = vsel %vm436, %v440, %v439
        %442 = vst [vmem:[%s258] sm:$0xff] %v441
        %s443 = sand.u32 %s111, 1
        %s444 = scalar_lea.sflag [#allocation6], %s443
        %s445 = sand.u32 %s111, 1
        %s446 = smul.addr %s445, 8
        %s447 = scalar_lea.vmem [#allocation10], %s446
        // Predicated region
        $region45: #{tpu_custom_call.1} parent=31 // pred_check
          %p448 = pneg %p121
        $region46: #{tpu_custom_call.1} parent=31 // pred_check_branch
          %450 = sbr.rel (%p448) target = $region48
        $region47: #{tpu_custom_call.1} parent=31 // pred_region
          %s452 = ssub.s32 128, 128
          %453 = vsyncadd %s444, %s452
          %s454 = smul.addr %s25, 128
          %s455 = scalar_lea.hbm %s4, %s454
          %s457 = sshll.u32 %s447, 4
          %s458 = int_to_ptr.vmem [resolvable:$true] %s457
          %460 = dma.vmem_to_hbm [thread:$0]  %s458, 128, %s455, %s444
        $region48: #{tpu_custom_call.1} parent=31 // pred_fallthru
          _
      $region32: #{tpu_custom_call.1} parent=5 // pred_fallthru
        _
      %p461 = scmp.le.s32.totalorder 2, %s20
      // Predicated region
      $region49: #{tpu_custom_call.1} parent=5 // pred_check
        %p462 = pneg %p461
      $region50: #{tpu_custom_call.1} parent=5 // pred_check_branch
        %464 = sbr.rel (%p462) target = $region52
      $region51: #{tpu_custom_call.1} parent=5 // pred_region
        %s465 = ssub.s32 %s20, 2
        // Predicated region
        $region53: #{tpu_custom_call.1} parent=51 // pred_check
          %p466 = pneg %p127
        $region54: #{tpu_custom_call.1} parent=51 // pred_check_branch
          %468 = sbr.rel (%p466) target = $region56
        $region55: #{tpu_custom_call.1} parent=51 // pred_region
          %s469 = sand.u32 %s112, 1
          %s470 = scalar_lea.sflag [#allocation6], %s469
          %s471 = sand.u32 %s112, 1
          %s472 = smul.addr %s471, 8
          %s473 = scalar_lea.vmem [#allocation10], %s472
          %474 = dma.done %s470, 128
        $region56: #{tpu_custom_call.1} parent=51 // pred_fallthru
          _
      $region52: #{tpu_custom_call.1} parent=5 // pred_fallthru
        _
    $region6: #{tpu_custom_call.1} parent=1 // loop_footer
      %s24 = sadd.s32 1, %s20
    $region7: #{tpu_custom_call.1} parent=1 // loop_footer_branch
      %19 = sbr.rel target = $region3
    $region8: #{tpu_custom_call.1} parent=1 // loop_exit
      _
    %475 = vsyncpa [#allocation5], 1
    %s476 = scalar_lea.sflag [#allocation5], 1
    %477 = vsyncpa %s476, 1
    %478 = vsyncpa [#allocation8], 1
    %s479 = scalar_lea.sflag [#allocation8], 1
    %480 = vsyncpa %s479, 1
    %481 = vsyncpa [#allocation6], 1
    %s482 = scalar_lea.sflag [#allocation6], 1
    %483 = vsyncpa %s482, 1

</llo_original>
